<compile_context>
chip_gen: v5e
topology: v5e:2x2
jax: 0.10.0
libtpu: 0.0.40
codegen_flags: <defaults>
</compile_context>

<pallas_src>
import jax
import jax.numpy as jnp
from jax.experimental import pallas as pl
from jax.experimental.pallas import tpu as pltpu


def nutrition_net_kernel(x_ref,
                         w1_ref, b1_ref,
                         w2_ref, b2_ref,
                         w3_ref, b3_ref,
                         w4_ref, b4_ref,
                         o_ref):
    """Fused 4-layer MLP on one (batch_tile, F) row-block.

    x arrives f32 and is cast to bf16 in-register; w1..w3 are bf16 (MXU
    inputs); accumulation, bias-add and ReLU run in f32; activations are cast
    back to bf16 only to feed the next matmul.  w4 is an f32 (1, 64) row
    applied with a VPU multiply + XLU lane reduction (no N=1 MXU matmul).
    """
    x = x_ref[...].astype(jnp.bfloat16)          # in-kernel cast, idle VALU slot

    # fc1 + relu1  (dropout1 = identity in eval mode)
    h = jnp.dot(x, w1_ref[...], preferred_element_type=jnp.float32)
    h = jnp.maximum(h + b1_ref[...], 0.0)

    # fc2 + relu2  (dropout2 = identity in eval mode)
    h = jnp.dot(h.astype(jnp.bfloat16), w2_ref[...],
                preferred_element_type=jnp.float32)
    h = jnp.maximum(h + b2_ref[...], 0.0)

    # fc3 + relu3
    h = jnp.dot(h.astype(jnp.bfloat16), w3_ref[...],
                preferred_element_type=jnp.float32)
    h = jnp.maximum(h + b3_ref[...], 0.0)

    # fc4 (64 -> 1 regression head, no activation): VPU mul + lane reduction.
    out = jnp.sum(h * w4_ref[...], axis=-1, keepdims=True) + b4_ref[...]
    o_ref[...] = out.astype(o_ref.dtype)


def _choose_batch_tile(B, max_tile=4096):
    """Tile-size heuristic (see header).  Whole batch for small B; for big B,
    largest tile <= max_tile (multiple of 256) giving an even step count >= 4
    so v7x gets >= 2 balanced grid steps per TensorCore."""
    if B <= max_tile:
        return B                                  # single step, one DMA, no split
    n = pl.cdiv(B, max_tile)
    if n % 2:
        n += 1
    n = max(n, 4)
    tile = -(-B // n)                             # ceil(B / n)
    tile = -(-tile // 256) * 256                  # round up to a multiple of 256
    return tile


def nutrition_net_forward(x, params, *, batch_tile=None):
    """Run the fused MLP.

    x:      (B, F) float32.
    params: output of prepare_params(): w1..w3 bf16 (in, out), b1..b4 f32
            (1, out), w4_row f32 (1, 64).
    """
    B, F = x.shape
    if batch_tile is None:
        batch_tile = _choose_batch_tile(B)

    n_tiles = pl.cdiv(B, batch_tile)
    B_pad = n_tiles * batch_tile
    if n_tiles > 1:
        assert batch_tile % 8 == 0, (
            "tiled batch blocks must satisfy the (8,128) sublane rule")

    x_in = x
    if B_pad != B:
        # Rare ragged-batch fallback (one extra pass over x).  Prefer a
        # batch_tile that divides B; _choose_batch_tile usually gives one.
        x_in = jnp.pad(x, ((0, B_pad - B), (0, 0)))

    w1, w2, w3 = params["w1"], params["w2"], params["w3"]
    b1, b2, b3, b4 = params["b1"], params["b2"], params["b3"], params["b4"]
    w4_row = params["w4_row"]

    # Weights/biases are replicated to every grid step (constant block index),
    # DMA'd once and kept resident; only the activation row-block moves.
    def rep(arr):
        return pl.BlockSpec(arr.shape, lambda i: (0, 0))

    out = pl.pallas_call(
        nutrition_net_kernel,
        out_shape=jax.ShapeDtypeStruct((B_pad, 1), jnp.float32),
        grid_spec=pltpu.PrefetchScalarGridSpec(
            num_scalar_prefetch=0,
            grid=(n_tiles,),
            in_specs=[
                pl.BlockSpec((batch_tile, F), lambda i: (i, 0)),
                rep(w1), rep(b1),
                rep(w2), rep(b2),
                rep(w3), rep(b3),
                rep(w4_row), rep(b4),
            ],
            out_specs=pl.BlockSpec((batch_tile, 1), lambda i: (i, 0)),
        ),
        compiler_params=pltpu.CompilerParams(
            dimension_semantics=("parallel",),      # megacore-shard the batch axis
            vmem_limit_bytes=32 * 1024 * 1024),     # ~12 MiB working set @ tile 4096
    )(x_in, w1, b1, w2, b2, w3, b3, w4_row, b4)

    return out[:B]


def init_params(key, input_size):
    """Deterministic f32 init mimicking PyTorch nn.Linear (uniform +/- 1/sqrt(fan_in)).
    Weights stored as (in, out), i.e. W_torch.T, so each layer is x @ W + b."""
    dims = [(input_size, 256), (256, 128), (128, 64), (64, 1)]
    params = {}
    for idx, (fan_in, fan_out) in enumerate(dims, start=1):
        key, kw, kb = jax.random.split(key, 3)
        bound = 1.0 / jnp.sqrt(jnp.float32(fan_in))
        params[f"w{idx}"] = jax.random.uniform(
            kw, (fan_in, fan_out), jnp.float32, -bound, bound)
        params[f"b{idx}"] = jax.random.uniform(
            kb, (1, fan_out), jnp.float32, -bound, bound)
    return params


def prepare_params(params_f32):
    """One-time conversion for the kernel: bf16 MXU weights, f32 biases,
    and the fc4 column reshaped to an f32 (1, 64) row for the VPU head."""
    assert params_f32["w4"].shape == (64, 1), (
        "fc4 weight must be a (64, 1) column (stored as W_torch.T)")
    return {
        "w1": params_f32["w1"].astype(jnp.bfloat16),
        "w2": params_f32["w2"].astype(jnp.bfloat16),
        "w3": params_f32["w3"].astype(jnp.bfloat16),
        "w4_row": params_f32["w4"].reshape(1, -1).astype(jnp.float32),
        "b1": params_f32["b1"],
        "b2": params_f32["b2"],
        "b3": params_f32["b3"],
        "b4": params_f32["b4"],
    }


def reference_forward(x, params_f32):
    """Pure-JAX reference with the same bf16-input / f32-accumulate numerics."""
    def lin(h, w, b):
        return jnp.dot(h.astype(jnp.bfloat16), w.astype(jnp.bfloat16),
                       preferred_element_type=jnp.float32) + b
    h = jnp.maximum(lin(x, params_f32["w1"], params_f32["b1"]), 0.0)
    h = jnp.maximum(lin(h, params_f32["w2"], params_f32["b2"]), 0.0)
    h = jnp.maximum(lin(h, params_f32["w3"], params_f32["b3"]), 0.0)
    return jnp.dot(h, params_f32["w4"],
                   preferred_element_type=jnp.float32) + params_f32["b4"]


if __name__ == "__main__":
    key = jax.random.PRNGKey(0)
    batch = 16          # small demo batch -> single grid step, tile == batch
    input_size = 32     # number of nutrition features

    kx, kp = jax.random.split(key)
    x = jax.random.normal(kx, (batch, input_size), jnp.float32)
    params_f32 = init_params(kp, input_size)
    params = prepare_params(params_f32)   # one-time bf16 weight conversion

    fwd = jax.jit(nutrition_net_forward)
    y = fwd(x, params)
    jax.block_until_ready(y)

    y_ref = reference_forward(x, params_f32)
    assert y.shape == (batch, 1)
    assert jnp.allclose(y, y_ref, atol=1e-3, rtol=1e-3), "mismatch vs reference"

    print("KERNEL_OK")
</pallas_src>

<mosaic_0001>
module attributes {stable_mosaic.version = 11 : i64} {
  func.func @nutrition_net_kernel(%arg0: i32, %arg1: memref<16x32xf32, #tpu.memory_space<vmem>>, %arg2: memref<32x256xbf16, #tpu.memory_space<vmem>>, %arg3: memref<1x256xf32, #tpu.memory_space<vmem>>, %arg4: memref<256x128xbf16, #tpu.memory_space<vmem>>, %arg5: memref<1x128xf32, #tpu.memory_space<vmem>>, %arg6: memref<128x64xbf16, #tpu.memory_space<vmem>>, %arg7: memref<1x64xf32, #tpu.memory_space<vmem>>, %arg8: memref<1x64xf32, #tpu.memory_space<vmem>>, %arg9: memref<1x1xf32, #tpu.memory_space<vmem>>, %arg10: memref<16x1xf32, #tpu.memory_space<vmem>>) attributes {dimension_semantics = [#tpu.dimension_semantics<parallel>], iteration_bounds = array<i64: 1>, scalar_prefetch = 0 : i64, scratch_operands = 0 : i64, tpu.core_type = #tpu.core_type<tc>, window_params = [{transform_indices = @transform_0, window_bounds = array<i64: 16, 32>}, {pipeline_mode = #tpu.pipeline_mode<synchronous>, transform_indices = @transform_1, window_bounds = array<i64: 32, 256>}, {pipeline_mode = #tpu.pipeline_mode<synchronous>, transform_indices = @transform_2, window_bounds = array<i64: 1, 256>}, {pipeline_mode = #tpu.pipeline_mode<synchronous>, transform_indices = @transform_3, window_bounds = array<i64: 256, 128>}, {pipeline_mode = #tpu.pipeline_mode<synchronous>, transform_indices = @transform_4, window_bounds = array<i64: 1, 128>}, {pipeline_mode = #tpu.pipeline_mode<synchronous>, transform_indices = @transform_5, window_bounds = array<i64: 128, 64>}, {pipeline_mode = #tpu.pipeline_mode<synchronous>, transform_indices = @transform_6, window_bounds = array<i64: 1, 64>}, {pipeline_mode = #tpu.pipeline_mode<synchronous>, transform_indices = @transform_7, window_bounds = array<i64: 1, 64>}, {pipeline_mode = #tpu.pipeline_mode<synchronous>, transform_indices = @transform_8, window_bounds = array<i64: 1, 1>}, {transform_indices = @transform_9, window_bounds = array<i64: 16, 1>}]} {
    %c0 = arith.constant 0 : index
    %c0_0 = arith.constant 0 : index
    %0 = vector.load %arg1[%c0, %c0_0] : memref<16x32xf32, #tpu.memory_space<vmem>>, vector<16x32xf32>
    %1 = arith.truncf %0 : vector<16x32xf32> to vector<16x32xbf16>
    %c0_1 = arith.constant 0 : index
    %c0_2 = arith.constant 0 : index
    %2 = vector.load %arg2[%c0_1, %c0_2] : memref<32x256xbf16, #tpu.memory_space<vmem>>, vector<32x256xbf16>
    %cst = arith.constant dense<0.000000e+00> : vector<16x256xf32>
    %3 = tpu.matmul %1, %2, %cst {dimension_numbers = #tpu.dot_dimension_numbers<[1], [0], [0], [1], [0, 0, 1, 1], [], []>} : vector<16x32xbf16>, vector<32x256xbf16>, vector<16x256xf32> -> vector<16x256xf32>
    %c0_3 = arith.constant 0 : index
    %c0_4 = arith.constant 0 : index
    %4 = vector.load %arg3[%c0_3, %c0_4] : memref<1x256xf32, #tpu.memory_space<vmem>>, vector<1x256xf32>
    %5 = vector.broadcast %4 : vector<1x256xf32> to vector<16x256xf32>
    %6 = arith.addf %3, %5 : vector<16x256xf32>
    %cst_5 = arith.constant 0.000000e+00 : f32
    %7 = vector.broadcast %cst_5 : f32 to vector<16x256xf32>
    %8 = arith.maximumf %6, %7 : vector<16x256xf32>
    %9 = arith.truncf %8 : vector<16x256xf32> to vector<16x256xbf16>
    %c0_6 = arith.constant 0 : index
    %c0_7 = arith.constant 0 : index
    %10 = vector.load %arg4[%c0_6, %c0_7] : memref<256x128xbf16, #tpu.memory_space<vmem>>, vector<256x128xbf16>
    %cst_8 = arith.constant dense<0.000000e+00> : vector<16x128xf32>
    %11 = tpu.matmul %9, %10, %cst_8 {dimension_numbers = #tpu.dot_dimension_numbers<[1], [0], [0], [1], [0, 0, 1, 1], [], []>} : vector<16x256xbf16>, vector<256x128xbf16>, vector<16x128xf32> -> vector<16x128xf32>
    %c0_9 = arith.constant 0 : index
    %c0_10 = arith.constant 0 : index
    %12 = vector.load %arg5[%c0_9, %c0_10] : memref<1x128xf32, #tpu.memory_space<vmem>>, vector<1x128xf32>
    %13 = vector.broadcast %12 : vector<1x128xf32> to vector<16x128xf32>
    %14 = arith.addf %11, %13 : vector<16x128xf32>
    %cst_11 = arith.constant 0.000000e+00 : f32
    %15 = vector.broadcast %cst_11 : f32 to vector<16x128xf32>
    %16 = arith.maximumf %14, %15 : vector<16x128xf32>
    %17 = arith.truncf %16 : vector<16x128xf32> to vector<16x128xbf16>
    %c0_12 = arith.constant 0 : index
    %c0_13 = arith.constant 0 : index
    %18 = vector.load %arg6[%c0_12, %c0_13] : memref<128x64xbf16, #tpu.memory_space<vmem>>, vector<128x64xbf16>
    %cst_14 = arith.constant dense<0.000000e+00> : vector<16x64xf32>
    %19 = tpu.matmul %17, %18, %cst_14 {dimension_numbers = #tpu.dot_dimension_numbers<[1], [0], [0], [1], [0, 0, 1, 1], [], []>} : vector<16x128xbf16>, vector<128x64xbf16>, vector<16x64xf32> -> vector<16x64xf32>
    %c0_15 = arith.constant 0 : index
    %c0_16 = arith.constant 0 : index
    %20 = vector.load %arg7[%c0_15, %c0_16] : memref<1x64xf32, #tpu.memory_space<vmem>>, vector<1x64xf32>
    %21 = vector.broadcast %20 : vector<1x64xf32> to vector<16x64xf32>
    %22 = arith.addf %19, %21 : vector<16x64xf32>
    %cst_17 = arith.constant 0.000000e+00 : f32
    %23 = vector.broadcast %cst_17 : f32 to vector<16x64xf32>
    %24 = arith.maximumf %22, %23 : vector<16x64xf32>
    %c0_18 = arith.constant 0 : index
    %c0_19 = arith.constant 0 : index
    %25 = vector.load %arg8[%c0_18, %c0_19] : memref<1x64xf32, #tpu.memory_space<vmem>>, vector<1x64xf32>
    %26 = vector.broadcast %25 : vector<1x64xf32> to vector<16x64xf32>
    %27 = arith.mulf %24, %26 : vector<16x64xf32>
    %cst_20 = arith.constant dense<0.000000e+00> : vector<16xf32>
    %28 = vector.multi_reduction <add>, %27, %cst_20 [1] : vector<16x64xf32> to vector<16xf32>
    %29 = vector.shape_cast %28 : vector<16xf32> to vector<16x1xf32>
    %c0_21 = arith.constant 0 : index
    %c0_22 = arith.constant 0 : index
    %30 = vector.load %arg9[%c0_21, %c0_22] : memref<1x1xf32, #tpu.memory_space<vmem>>, vector<1x1xf32>
    %31 = vector.broadcast %30 : vector<1x1xf32> to vector<16x1xf32>
    %32 = arith.addf %29, %31 : vector<16x1xf32>
    %c0_23 = arith.constant 0 : index
    %c0_24 = arith.constant 0 : index
    %33 = vector.load %arg10[%c0_23, %c0_24] : memref<16x1xf32, #tpu.memory_space<vmem>>, vector<16x1xf32>
    tpu.vector_store %arg10[%c0_23, %c0_24], %32 {strides = array<i32>} : memref<16x1xf32, #tpu.memory_space<vmem>>, vector<16x1xf32>,
    return
  }
  func.func @transform_0(%arg0: i32) -> (i32, i32) {
    %c0_i32 = arith.constant 0 : i32
    %c0_i32_0 = arith.constant 0 : i32
    return %arg0, %c0_i32 : i32, i32
  }
  func.func @transform_1(%arg0: i32) -> (i32, i32) {
    %c0_i32 = arith.constant 0 : i32
    %c0_i32_0 = arith.constant 0 : i32
    %c0_i32_1 = arith.constant 0 : i32
    return %c0_i32, %c0_i32_0 : i32, i32
  }
  func.func @transform_2(%arg0: i32) -> (i32, i32) {
    %c0_i32 = arith.constant 0 : i32
    %c0_i32_0 = arith.constant 0 : i32
    %c0_i32_1 = arith.constant 0 : i32
    return %c0_i32, %c0_i32_0 : i32, i32
  }
  func.func @transform_3(%arg0: i32) -> (i32, i32) {
    %c0_i32 = arith.constant 0 : i32
    %c0_i32_0 = arith.constant 0 : i32
    %c0_i32_1 = arith.constant 0 : i32
    return %c0_i32, %c0_i32_0 : i32, i32
  }
  func.func @transform_4(%arg0: i32) -> (i32, i32) {
    %c0_i32 = arith.constant 0 : i32
    %c0_i32_0 = arith.constant 0 : i32
    %c0_i32_1 = arith.constant 0 : i32
    return %c0_i32, %c0_i32_0 : i32, i32
  }
  func.func @transform_5(%arg0: i32) -> (i32, i32) {
    %c0_i32 = arith.constant 0 : i32
    %c0_i32_0 = arith.constant 0 : i32
    %c0_i32_1 = arith.constant 0 : i32
    return %c0_i32, %c0_i32_0 : i32, i32
  }
  func.func @transform_6(%arg0: i32) -> (i32, i32) {
    %c0_i32 = arith.constant 0 : i32
    %c0_i32_0 = arith.constant 0 : i32
    %c0_i32_1 = arith.constant 0 : i32
    return %c0_i32, %c0_i32_0 : i32, i32
  }
  func.func @transform_7(%arg0: i32) -> (i32, i32) {
    %c0_i32 = arith.constant 0 : i32
    %c0_i32_0 = arith.constant 0 : i32
    %c0_i32_1 = arith.constant 0 : i32
    return %c0_i32, %c0_i32_0 : i32, i32
  }
  func.func @transform_8(%arg0: i32) -> (i32, i32) {
    %c0_i32 = arith.constant 0 : i32
    %c0_i32_0 = arith.constant 0 : i32
    %c0_i32_1 = arith.constant 0 : i32
    return %c0_i32, %c0_i32_0 : i32, i32
  }
  func.func @transform_9(%arg0: i32) -> (i32, i32) {
    %c0_i32 = arith.constant 0 : i32
    %c0_i32_0 = arith.constant 0 : i32
    return %arg0, %c0_i32 : i32, i32
  }
}

</mosaic_0001>

<llo_original>
// kernel: nutrition_net_forward.1
$region0: #{nutrition_net_forward.1}
  #allocation0 [shape = 'u32[]', space=smem, size = 0x4, offset = 0x4, fixed_abs, tag = 'smem constant byte address 0x4 - core index']
  #allocation1 [shape = 'u32[72,128]{1,0:T(1,128)}', space=vmem, size = 0x9000, scoped, tag = 'internal scratch']
  #allocation2 [shape = 'f32[1,1]{1,0:T(1,128)S(1)}', space=vmem, size = 0x200, scoped, tag = 'scoped memory for nutrition_net_forward.1']
  %s0 = inlined_call_operand.vmem [shape: f32[16,32], index: 0, kind: input, shape index: {}]
  %s1 = inlined_call_operand.vmem [shape: bf16[32,256], index: 1, kind: input, shape index: {}]
  %s2 = inlined_call_operand.vmem [shape: f32[1,256], index: 2, kind: input, shape index: {}]
  %s3 = inlined_call_operand.hbm [shape: bf16[256,128], index: 3, kind: input, shape index: {}]
  %s4 = inlined_call_operand.vmem [shape: f32[1,128], index: 4, kind: input, shape index: {}]
  %s5 = inlined_call_operand.vmem [shape: bf16[128,64], index: 5, kind: input, shape index: {}]
  %s6 = inlined_call_operand.vmem [shape: f32[1,64], index: 6, kind: input, shape index: {}]
  %s7 = inlined_call_operand.vmem [shape: f32[1,64], index: 7, kind: input, shape index: {}]
  %s8 = inlined_call_operand.<no memory space> [shape: f32[1,1], index: 8, kind: input, shape index: {}]
  %s9 = inlined_call_operand.vmem [shape: f32[16,1], index: 9, kind: output, shape index: {}]
  %s10 = sld [smem:[#allocation0]]
  $region50: #{nutrition_net_forward.1} parent=0
    _
  %s12 = ssub.s32 1, %s10
  %s13 = scalar_select 0, %s12, %s10
  %v14 = vstv %s8
  %15 = vst [vmem:[#allocation2] sm:$0x1] %v14
  $region1: #{nutrition_net_forward.1} parent=0
    #allocation3 [shape = 'u8[65536]{0}', space=vmem, size = 0x10000, scoped, tag = 'input window, operand 3, single buffered']
    #allocation4 [shape = 's32[1]{0}', space=sflag, size = 0x4, scoped, tag = 'scoped memory for nutrition_net_forward.1']
    %16 = vsyncpa [#allocation4], 0
    // Predicated region
    $region2: #{nutrition_net_forward.1} parent=1 // pred_check
      _
    $region3: #{nutrition_net_forward.1} parent=1 // pred_check_branch
      %18 = sbr.rel (0) target = $region5
    $region4: #{nutrition_net_forward.1} parent=1 // pred_region
      _
    $region5: #{nutrition_net_forward.1} parent=1 // pred_fallthru
      _
    // Predicated region
    $region6: #{nutrition_net_forward.1} parent=1 // pred_check
      _
    $region7: #{nutrition_net_forward.1} parent=1 // pred_check_branch
      %20 = sbr.rel (0) target = $region9
    $region8: #{nutrition_net_forward.1} parent=1 // pred_region
      _
    $region9: #{nutrition_net_forward.1} parent=1 // pred_fallthru
      _
    // Predicated region
    $region10: #{nutrition_net_forward.1} parent=1 // pred_check
      _
    $region11: #{nutrition_net_forward.1} parent=1 // pred_check_branch
      %22 = sbr.rel (0) target = $region13
    $region12: #{nutrition_net_forward.1} parent=1 // pred_region
      _
    $region13: #{nutrition_net_forward.1} parent=1 // pred_fallthru
      _
    // Predicated region
    $region14: #{nutrition_net_forward.1} parent=1 // pred_check
      _
    $region15: #{nutrition_net_forward.1} parent=1 // pred_check_branch
      %24 = sbr.rel (0) target = $region17
    $region16: #{nutrition_net_forward.1} parent=1 // pred_region
      %26 = vsyncadd [#allocation4], 0
      %s27 = sshll.u32 %s3, 4
      %s28 = int_to_ptr.hbm [resolvable:$true] %s27
      %s29 = sshll.u32 [#allocation3], 4
      %s30 = int_to_ptr.vmem [resolvable:$true] %s29
      %35 = dma.hbm_to_vmem [thread:$0]  %s28, 2048, %s30, [#allocation4], 64, 64, 4
    $region17: #{nutrition_net_forward.1} parent=1 // pred_fallthru
      _
    // Predicated region
    $region18: #{nutrition_net_forward.1} parent=1 // pred_check
      _
    $region19: #{nutrition_net_forward.1} parent=1 // pred_check_branch
      %37 = sbr.rel (0) target = $region21
    $region20: #{nutrition_net_forward.1} parent=1 // pred_region
      _
    $region21: #{nutrition_net_forward.1} parent=1 // pred_fallthru
      _
    // Predicated region
    $region22: #{nutrition_net_forward.1} parent=1 // pred_check
      _
    $region23: #{nutrition_net_forward.1} parent=1 // pred_check_branch
      %39 = sbr.rel (0) target = $region25
    $region24: #{nutrition_net_forward.1} parent=1 // pred_region
      _
    $region25: #{nutrition_net_forward.1} parent=1 // pred_fallthru
      _
    // Predicated region
    $region26: #{nutrition_net_forward.1} parent=1 // pred_check
      _
    $region27: #{nutrition_net_forward.1} parent=1 // pred_check_branch
      %41 = sbr.rel (0) target = $region29
    $region28: #{nutrition_net_forward.1} parent=1 // pred_region
      _
    $region29: #{nutrition_net_forward.1} parent=1 // pred_fallthru
      _
    // Predicated region
    $region30: #{nutrition_net_forward.1} parent=1 // pred_check
      _
    $region31: #{nutrition_net_forward.1} parent=1 // pred_check_branch
      %43 = sbr.rel (0) target = $region33
    $region32: #{nutrition_net_forward.1} parent=1 // pred_region
      _
    $region33: #{nutrition_net_forward.1} parent=1 // pred_fallthru
      _
    // Predicated region
    $region34: #{nutrition_net_forward.1} parent=1 // pred_check
      _
    $region35: #{nutrition_net_forward.1} parent=1 // pred_check_branch
      %45 = sbr.rel (0) target = $region37
    $region36: #{nutrition_net_forward.1} parent=1 // pred_region
      _
    $region37: #{nutrition_net_forward.1} parent=1 // pred_fallthru
      _
    // Predicated region
    $region38: #{nutrition_net_forward.1} parent=1 // pred_check
      _
    $region39: #{nutrition_net_forward.1} parent=1 // pred_check_branch
      %47 = sbr.rel (0) target = $region41
    $region40: #{nutrition_net_forward.1} parent=1 // pred_region
      %49 = dma.done [#allocation4], 2048
    $region41: #{nutrition_net_forward.1} parent=1 // pred_fallthru
      _
    %v51 = vld [vmem:[%s0] sm:$0xff]
    %v52 = vld [vmem:[%s0 + $0x8] sm:$0xff]
    %v53 = vpack.c.bf16 %v52, %v51
    %v54 = vld [vmem:[%s1] sm:$0xff]
    %v55 = vld [vmem:[%s1 + $0x8] sm:$0xff]
    %v56 = vld [vmem:[%s1 + $0x10] sm:$0xff]
    %v57 = vld [vmem:[%s1 + $0x18] sm:$0xff]
    %v58 = vld [vmem:[%s2] sm:$0x3]
    %v60 = vperm.slane %v58, 0
    %v61 = vperm.slane %v58, 1
    %v68 = vunpack.c.l.b16 %v54
    %v69 = vunpack.c.h.b16 %v54
    %v70 = vunpack.c.l.b16 %v55
    %v71 = vunpack.c.h.b16 %v55
    %v72 = vunpack.c.l.b16 %v56
    %v73 = vunpack.c.h.b16 %v56
    %v74 = vunpack.c.l.b16 %v57
    %v75 = vunpack.c.h.b16 %v57
    %v76 = vpack.c.b16 %v70, %v68
    %v77 = vpack.c.b16 %v71, %v69
    %v78 = vpack.c.b16 %v74, %v72
    %v79 = vpack.c.b16 %v75, %v73
    %vm84 = vcmask 261120
    %v86 = vsel %vm84, %v53, 0
    %88 = vmatpush.bf16.msra.mxu0 0
    %89 = vmatpush.bf16.msra.mxu0 0
    %90 = vmatpush.bf16.msra.mxu0 0
    %91 = vmatpush.bf16.msra.mxu0 0
    %92 = vmatpush.bf16.msra.mxu0 0
    %93 = vmatpush.bf16.msra.mxu0 0
    %94 = vmatpush.bf16.msra.mxu0 %v78
    %95 = vmatpush.bf16.msra.mxu0 %v76
    %96 = vmatmul.bf16.gmra.mxu0 %v86
    %v97 = vpop.f32.mrf.mxu0
    %v98 = vadd.f32 %v60, %v97
    %v99 = vpop.f32.mrf.mxu0
    %v100 = vadd.f32 %v60, %v99
    %101 = vdwg.mxu0
    %102 = vmatpush.bf16.msra.mxu0 0
    %103 = vmatpush.bf16.msra.mxu0 0
    %104 = vmatpush.bf16.msra.mxu0 0
    %105 = vmatpush.bf16.msra.mxu0 0
    %106 = vmatpush.bf16.msra.mxu0 0
    %107 = vmatpush.bf16.msra.mxu0 0
    %108 = vmatpush.bf16.msra.mxu0 %v79
    %109 = vmatpush.bf16.msra.mxu0 %v77
    %110 = vmatmul.bf16.gmra.mxu0 %v86
    %v111 = vpop.f32.mrf.mxu0
    %v112 = vadd.f32 %v61, %v111
    %v113 = vpop.f32.mrf.mxu0
    %v114 = vadd.f32 %v61, %v113
    %115 = vdwg.mxu0
    %v116 = vmax.f32 %v98, 0.0
    %v117 = vmax.f32 %v112, 0.0
    %v118 = vmax.f32 %v100, 0.0
    %v119 = vmax.f32 %v114, 0.0
    %v120 = vpack.c.bf16 %v118, %v116
    %v121 = vpack.c.bf16 %v119, %v117
    %v122 = vld [vmem:[#allocation3] sm:$0xf]
    %v123 = vld [vmem:[#allocation3 + $0x4] sm:$0xf]
    %v124 = vld [vmem:[#allocation3 + $0x8] sm:$0xf]
    %v125 = vld [vmem:[#allocation3 + $0xc] sm:$0xf]
    %v126 = vld [vmem:[#allocation3 + $0x10] sm:$0xf]
    %v127 = vld [vmem:[#allocation3 + $0x14] sm:$0xf]
    %v128 = vld [vmem:[#allocation3 + $0x18] sm:$0xf]
    %v129 = vld [vmem:[#allocation3 + $0x1c] sm:$0xf]
    %v130 = vld [vmem:[#allocation3 + $0x20] sm:$0xf]
    %v131 = vld [vmem:[#allocation3 + $0x24] sm:$0xf]
    %v132 = vld [vmem:[#allocation3 + $0x28] sm:$0xf]
    %v133 = vld [vmem:[#allocation3 + $0x2c] sm:$0xf]
    %v134 = vld [vmem:[#allocation3 + $0x30] sm:$0xf]
    %v135 = vld [vmem:[#allocation3 + $0x34] sm:$0xf]
    %v136 = vld [vmem:[#allocation3 + $0x38] sm:$0xf]
    %v137 = vld [vmem:[#allocation3 + $0x3c] sm:$0xf]
    %v138 = vld [vmem:[#allocation3 + $0x40] sm:$0xf]
    %v139 = vld [vmem:[#allocation3 + $0x44] sm:$0xf]
    %v140 = vld [vmem:[#allocation3 + $0x48] sm:$0xf]
    %v141 = vld [vmem:[#allocation3 + $0x4c] sm:$0xf]
    %v142 = vld [vmem:[#allocation3 + $0x50] sm:$0xf]
    %v143 = vld [vmem:[#allocation3 + $0x54] sm:$0xf]
    %v144 = vld [vmem:[#allocation3 + $0x58] sm:$0xf]
    %v145 = vld [vmem:[#allocation3 + $0x5c] sm:$0xf]
    %v146 = vld [vmem:[#allocation3 + $0x60] sm:$0xf]
    %v147 = vld [vmem:[#allocation3 + $0x64] sm:$0xf]
    %v148 = vld [vmem:[#allocation3 + $0x68] sm:$0xf]
    %v149 = vld [vmem:[#allocation3 + $0x6c] sm:$0xf]
    %v150 = vld [vmem:[#allocation3 + $0x70] sm:$0xf]
    %v151 = vld [vmem:[#allocation3 + $0x74] sm:$0xf]
    %v152 = vld [vmem:[#allocation3 + $0x78] sm:$0xf]
    %v153 = vld [vmem:[#allocation3 + $0x7c] sm:$0xf]
    %v154 = vld [vmem:[%s4] sm:$0x1]
    %v156 = vperm.slane %v154, 0
    %v190 = vunpack.c.l.b16 %v122
    %v191 = vunpack.c.l.b16 %v123
    %v192 = vunpack.c.l.b16 %v124
    %v193 = vunpack.c.l.b16 %v125
    %v194 = vunpack.c.l.b16 %v126
    %v195 = vunpack.c.l.b16 %v127
    %v196 = vunpack.c.l.b16 %v128
    %v197 = vunpack.c.l.b16 %v129
    %v198 = vunpack.c.l.b16 %v130
    %v199 = vunpack.c.l.b16 %v131
    %v200 = vunpack.c.l.b16 %v132
    %v201 = vunpack.c.l.b16 %v133
    %v202 = vunpack.c.l.b16 %v134
    %v203 = vunpack.c.l.b16 %v135
    %v204 = vunpack.c.l.b16 %v136
    %v205 = vunpack.c.l.b16 %v137
    %v206 = vunpack.c.l.b16 %v138
    %v207 = vunpack.c.l.b16 %v139
    %v208 = vunpack.c.l.b16 %v140
    %v209 = vunpack.c.l.b16 %v141
    %v210 = vunpack.c.l.b16 %v142
    %v211 = vunpack.c.l.b16 %v143
    %v212 = vunpack.c.l.b16 %v144
    %v213 = vunpack.c.l.b16 %v145
    %v214 = vunpack.c.l.b16 %v146
    %v215 = vunpack.c.l.b16 %v147
    %v216 = vunpack.c.l.b16 %v148
    %v217 = vunpack.c.l.b16 %v149
    %v218 = vunpack.c.l.b16 %v150
    %v219 = vunpack.c.l.b16 %v151
    %v220 = vunpack.c.l.b16 %v152
    %v221 = vunpack.c.l.b16 %v153
    %v222 = vpack.c.b16 %v191, %v190
    %v223 = vpack.c.b16 %v193, %v192
    %v224 = vpack.c.b16 %v195, %v194
    %v225 = vpack.c.b16 %v197, %v196
    %v226 = vpack.c.b16 %v199, %v198
    %v227 = vpack.c.b16 %v201, %v200
    %v228 = vpack.c.b16 %v203, %v202
    %v229 = vpack.c.b16 %v205, %v204
    %v230 = vpack.c.b16 %v207, %v206
    %v231 = vpack.c.b16 %v209, %v208
    %v232 = vpack.c.b16 %v211, %v210
    %v233 = vpack.c.b16 %v213, %v212
    %v234 = vpack.c.b16 %v215, %v214
    %v235 = vpack.c.b16 %v217, %v216
    %v236 = vpack.c.b16 %v219, %v218
    %v237 = vpack.c.b16 %v221, %v220
    %254 = vmatpush.bf16.msra.mxu0 %v229
    %255 = vmatpush.bf16.msra.mxu0 %v228
    %256 = vmatpush.bf16.msra.mxu0 %v227
    %257 = vmatpush.bf16.msra.mxu0 %v226
    %258 = vmatpush.bf16.msra.mxu0 %v225
    %259 = vmatpush.bf16.msra.mxu0 %v224
    %260 = vmatpush.bf16.msra.mxu0 %v223
    %261 = vmatpush.bf16.msra.mxu0 %v222
    %262 = vmatmul.bf16.gmra.mxu0 %v120
    %v263 = vpop.f32.mrf.mxu0
    %v264 = vadd.f32 %v156, %v263
    %v265 = vpop.f32.mrf.mxu0
    %v266 = vadd.f32 %v156, %v265
    %267 = vdwg.mxu0
    %268 = vmatpush.bf16.msra.mxu0 %v237
    %269 = vmatpush.bf16.msra.mxu0 %v236
    %270 = vmatpush.bf16.msra.mxu0 %v235
    %271 = vmatpush.bf16.msra.mxu0 %v234
    %272 = vmatpush.bf16.msra.mxu0 %v233
    %273 = vmatpush.bf16.msra.mxu0 %v232
    %274 = vmatpush.bf16.msra.mxu0 %v231
    %275 = vmatpush.bf16.msra.mxu0 %v230
    %276 = vmatmul.bf16.gmra.mxu0 %v121
    %v277 = vpop.f32.mrf.mxu0
    %v278 = vadd.f32 %v264, %v277
    %v279 = vpop.f32.mrf.mxu0
    %v280 = vadd.f32 %v266, %v279
    %281 = vdwg.mxu0
    %v282 = vmax.f32 %v278, 0.0
    %v283 = vmax.f32 %v280, 0.0
    %v284 = vpack.c.bf16 %v283, %v282
    %v285 = vld [vmem:[%s5] sm:$0xf]
    %v286 = vld [vmem:[%s5 + $0x4] sm:$0xf]
    %v287 = vld [vmem:[%s5 + $0x8] sm:$0xf]
    %v288 = vld [vmem:[%s5 + $0xc] sm:$0xf]
    %v289 = vld [vmem:[%s5 + $0x10] sm:$0xf]
    %v290 = vld [vmem:[%s5 + $0x14] sm:$0xf]
    %v291 = vld [vmem:[%s5 + $0x18] sm:$0xf]
    %v292 = vld [vmem:[%s5 + $0x1c] sm:$0xf]
    %v293 = vld [vmem:[%s5 + $0x20] sm:$0xf]
    %v294 = vld [vmem:[%s5 + $0x24] sm:$0xf]
    %v295 = vld [vmem:[%s5 + $0x28] sm:$0xf]
    %v296 = vld [vmem:[%s5 + $0x2c] sm:$0xf]
    %v297 = vld [vmem:[%s5 + $0x30] sm:$0xf]
    %v298 = vld [vmem:[%s5 + $0x34] sm:$0xf]
    %v299 = vld [vmem:[%s5 + $0x38] sm:$0xf]
    %v300 = vld [vmem:[%s5 + $0x3c] sm:$0xf]
    %v301 = vld [vmem:[%s6] sm:$0x1]
    %v303 = vperm.slane %v301, 0
    %v321 = vunpack.c.l.b16 %v285
    %v322 = vunpack.c.l.b16 %v286
    %v323 = vunpack.c.l.b16 %v287
    %v324 = vunpack.c.l.b16 %v288
    %v325 = vunpack.c.l.b16 %v289
    %v326 = vunpack.c.l.b16 %v290
    %v327 = vunpack.c.l.b16 %v291
    %v328 = vunpack.c.l.b16 %v292
    %v329 = vunpack.c.l.b16 %v293
    %v330 = vunpack.c.l.b16 %v294
    %v331 = vunpack.c.l.b16 %v295
    %v332 = vunpack.c.l.b16 %v296
    %v333 = vunpack.c.l.b16 %v297
    %v334 = vunpack.c.l.b16 %v298
    %v335 = vunpack.c.l.b16 %v299
    %v336 = vunpack.c.l.b16 %v300
    %v337 = vpack.c.b16 %v322, %v321
    %v338 = vpack.c.b16 %v324, %v323
    %v339 = vpack.c.b16 %v326, %v325
    %v340 = vpack.c.b16 %v328, %v327
    %v341 = vpack.c.b16 %v330, %v329
    %v342 = vpack.c.b16 %v332, %v331
    %v343 = vpack.c.b16 %v334, %v333
    %v344 = vpack.c.b16 %v336, %v335
    %353 = vmatpush.bf16.msra.mxu0 %v344
    %354 = vmatpush.bf16.msra.mxu0 %v343
    %355 = vmatpush.bf16.msra.mxu0 %v342
    %356 = vmatpush.bf16.msra.mxu0 %v341
    %357 = vmatpush.bf16.msra.mxu0 %v340
    %358 = vmatpush.bf16.msra.mxu0 %v339
    %359 = vmatpush.bf16.msra.mxu0 %v338
    %360 = vmatpush.bf16.msra.mxu0 %v337
    %361 = vmatmul.bf16.gmra.mxu0 %v284
    %v362 = vpop.f32.mrf.mxu0
    %v363 = vadd.f32 %v303, %v362
    %v364 = vpop.f32.mrf.mxu0
    %v365 = vadd.f32 %v303, %v364
    %366 = vdwg.mxu0
    %v367 = vmax.f32 %v363, 0.0
    %v368 = vmax.f32 %v365, 0.0
    %v369 = vld [vmem:[%s7] sm:$0x1]
    %v371 = vperm.slane %v369, 0
    %v373 = vmul.f32 %v367, %v371
    %v374 = vmul.f32 %v368, %v371
    %vm375 = vcmask 523264
    %v376 = vsel %vm375, %v373, 0.0
    %377 = vadd.xlane.f32.xlu0 %v376
    %v378 = vpop.xlane.xlu0 %377
    %v379 = vsel %vm375, %v374, 0.0
    %380 = vadd.xlane.f32.xlu0 %v379
    %v381 = vpop.xlane.xlu0 %380
    %v382 = vld [vmem:[#allocation2] sm:$0x1]
    %v384 = vperm.slane %v382, 0
    %v386 = vadd.f32 %v378, %v384
    %v387 = vadd.f32 %v381, %v384
    %vm388 = vcmask 7168
    %389 = vst.msk [vmem:[%s9] sm:$0xff] %vm388, %v386
    %390 = vst.msk [vmem:[%s9 + $0x8] sm:$0xff] %vm388, %v387
    // Predicated region
    $region42: #{nutrition_net_forward.1} parent=1 // pred_check
      _
    $region43: #{nutrition_net_forward.1} parent=1 // pred_check_branch
      %392 = sbr.rel (0) target = $region45
    $region44: #{nutrition_net_forward.1} parent=1 // pred_region
      _
    $region45: #{nutrition_net_forward.1} parent=1 // pred_fallthru
      _
    // Predicated region
    $region46: #{nutrition_net_forward.1} parent=1 // pred_check
      _
    $region47: #{nutrition_net_forward.1} parent=1 // pred_check_branch
      %394 = sbr.rel (0) target = $region49
    $region48: #{nutrition_net_forward.1} parent=1 // pred_region
      _
    $region49: #{nutrition_net_forward.1} parent=1 // pred_fallthru
      _
    %395 = vsyncpa [#allocation4], 1

</llo_original>
